<compile_context>
chip_gen: v7x
topology: tpu7x:2x2x1
jax: 0.10.0
libtpu: 0.0.40
codegen_flags: <defaults>
</compile_context>

<pallas_src>
import math

import jax
import jax.numpy as jnp
from jax.experimental import pallas as pl
from jax.experimental.pallas import tpu as pltpu


def _round_up(x: int, m: int) -> int:
    return (x + m - 1) // m * m


# ---------------------------------------------------------------------------
# Kernels
# ---------------------------------------------------------------------------
def _fast_kernel_bias(x_ref, w_ref, b_ref, o_ref):
    # Whole (padded) K and N in one tile; grid is over M only.
    o_ref[...] = (
        jnp.dot(x_ref[...], w_ref[...], preferred_element_type=jnp.float32)
        + b_ref[...]
    ).astype(o_ref.dtype)


def _fast_kernel(x_ref, w_ref, o_ref):
    o_ref[...] = jnp.dot(
        x_ref[...], w_ref[...], preferred_element_type=jnp.float32
    ).astype(o_ref.dtype)


def _tiled_kernel_bias(x_ref, w_ref, b_ref, o_ref):
    # 3-D grid (i, j, k). Output block is resident across k (same (i, j) index),
    # so we accumulate directly into the f32 output — no scratch accumulator.
    @pl.when(pl.program_id(2) == 0)
    def _init():
        o_ref[...] = jnp.zeros_like(o_ref)

    o_ref[...] += jnp.dot(
        x_ref[...], w_ref[...], preferred_element_type=jnp.float32
    )

    @pl.when(pl.program_id(2) == pl.num_programs(2) - 1)
    def _finalize():
        o_ref[...] += b_ref[...]  # bias added exactly once


def _tiled_kernel(x_ref, w_ref, o_ref):
    @pl.when(pl.program_id(2) == 0)
    def _init():
        o_ref[...] = jnp.zeros_like(o_ref)

    o_ref[...] += jnp.dot(
        x_ref[...], w_ref[...], preferred_element_type=jnp.float32
    )


# ---------------------------------------------------------------------------
# Wrapper
# ---------------------------------------------------------------------------
def linear(x, w, b=None, *, n_out=None, tm=512, tn=512, tk=1024, use_bf16=False):
    """y = x @ w + b.

    x: (..., K) float32 (logical K may be <= w.shape[0] if w was padded at init)
    w: (Kw, Nw) float32, (in, out) layout, possibly pre-padded to 128-multiples
    b: (Nw,) float32 or None (possibly pre-padded)
    n_out: logical output features (defaults to Nw)
    """
    *lead, K = x.shape
    Kw, Nw = w.shape
    n_out = Nw if n_out is None else n_out
    M = int(math.prod(lead)) if lead else 1
    x2 = x.reshape(M, K)

    # Tile sizes: capped by the (padded) problem size. M tiles 8-aligned,
    # K/N tiles 128-aligned (MXU / lane-dense requirement).
    tm = max(8, min(tm, _round_up(M, 8)))
    tn = max(128, min(tn, _round_up(Nw, 128)))
    tk = max(128, min(tk, _round_up(Kw, 128)))
    Mp, Np, Kp = _round_up(M, tm), _round_up(Nw, tn), _round_up(Kw, tk)

    # Padding (no-ops for weights/bias pre-padded at init and for aligned x).
    xp = x2 if (Mp == M and Kp == K) else jnp.pad(x2, ((0, Mp - M), (0, Kp - K)))
    wp = w if (Kp == Kw and Np == Nw) else jnp.pad(w, ((0, Kp - Kw), (0, Np - Nw)))
    if b is not None:
        bp = b if b.shape[0] == Np else jnp.pad(b, (0, Np - b.shape[0]))
        bp = bp.reshape(1, Np)

    if use_bf16:
        # bf16 is the native MXU dtype on v5e/v6e/v7x; accumulation stays f32.
        xp = xp.astype(jnp.bfloat16)
        wp = wp.astype(jnp.bfloat16)

    out_dtype = jnp.float32
    flops = 2 * M * n_out * K
    out_shape = jax.ShapeDtypeStruct((Mp, Np), out_dtype)

    fast_path = (Np == tn) and (Kp == tk)  # whole weight fits a single tile

    if fast_path:
        grid = (Mp // tm,)
        bytes_accessed = int(xp.size * xp.dtype.itemsize
                             + wp.size * wp.dtype.itemsize
                             + Mp * Np * 4)
        in_specs = [
            pl.BlockSpec((tm, Kp), lambda i: (i, 0)),
            pl.BlockSpec((Kp, Np), lambda i: (0, 0)),
        ]
        args = [xp, wp]
        kernel = _fast_kernel
        if b is not None:
            in_specs.append(pl.BlockSpec((1, Np), lambda i: (0, 0)))
            args.append(bp)
            kernel = _fast_kernel_bias
        out = pl.pallas_call(
            kernel,
            out_shape=out_shape,
            grid=grid,
            in_specs=in_specs,
            out_specs=pl.BlockSpec((tm, Np), lambda i: (i, 0)),
            compiler_params=pltpu.CompilerParams(
                dimension_semantics=("parallel",),
            ),
            cost_estimate=pl.CostEstimate(
                flops=flops, transcendentals=0, bytes_accessed=bytes_accessed
            ),
        )(*args)
    else:
        grid = (Mp // tm, Np // tn, Kp // tk)
        bytes_accessed = int(xp.size * xp.dtype.itemsize * (Np // tn)
                             + wp.size * wp.dtype.itemsize * (Mp // tm)
                             + Mp * Np * 4)
        in_specs = [
            pl.BlockSpec((tm, tk), lambda i, j, k: (i, k)),
            pl.BlockSpec((tk, tn), lambda i, j, k: (k, j)),
        ]
        args = [xp, wp]
        kernel = _tiled_kernel
        if b is not None:
            in_specs.append(pl.BlockSpec((1, tn), lambda i, j, k: (0, j)))
            args.append(bp)
            kernel = _tiled_kernel_bias
        out = pl.pallas_call(
            kernel,
            out_shape=out_shape,
            grid=grid,
            in_specs=in_specs,
            out_specs=pl.BlockSpec((tm, tn), lambda i, j, k: (i, j)),
            compiler_params=pltpu.CompilerParams(
                dimension_semantics=("parallel", "parallel", "arbitrary"),
            ),
            cost_estimate=pl.CostEstimate(
                flops=flops, transcendentals=0, bytes_accessed=bytes_accessed
            ),
        )(*args)

    out = out[:M, :n_out]
    return out.reshape(*lead, n_out)


# ---------------------------------------------------------------------------
# Module: Linear (xavier_uniform weight, zero bias), weight stored (in, out)
# and PRE-PADDED to 128-multiples so the per-call path never pads/transposes.
# ---------------------------------------------------------------------------
def init_linear_params(key, in_features, out_features, bias=True):
    # PyTorch xavier_uniform_ on an (out, in) weight; transpose once here.
    bound = math.sqrt(6.0 / (in_features + out_features))
    w_torch_layout = jax.random.uniform(
        key, (out_features, in_features), jnp.float32, -bound, bound
    )
    w = w_torch_layout.T  # (in, out)
    kp, np_ = _round_up(in_features, 128), _round_up(out_features, 128)
    w = jnp.pad(w, ((0, kp - in_features), (0, np_ - out_features)))
    params = {
        "w": w,                      # (Kp, Np), zero-padded
        "n_out": out_features,
        "in_features": in_features,
        "b": jnp.zeros((np_,), jnp.float32) if bias else None,
    }
    return params


def linear_forward(params, x):
    return linear(x, params["w"], params["b"], n_out=params["n_out"])


# ---------------------------------------------------------------------------
# Pure-JAX reference for verification
# ---------------------------------------------------------------------------
def reference(params, x):
    k, n = params["in_features"], params["n_out"]
    y = x @ params["w"][:k, :n]
    if params["b"] is not None:
        y = y + params["b"][:n]
    return y


if __name__ == "__main__":
    root = jax.random.PRNGKey(0)
    kp_key, kx, kp2, kx2 = jax.random.split(root, 4)

    # --- Small shapes consistent with the module's use in the transformer:
    # (batch=2, seq=8, in_features=32) -> out_features=64.  Exercises the fast
    # (single-axis grid, no-reduction) path with an init-padded weight.
    B, L, d_in, d_out = 2, 8, 32, 64
    params = init_linear_params(kp_key, d_in, d_out, bias=True)
    x = jax.random.normal(kx, (B, L, d_in), jnp.float32)

    out = jax.block_until_ready(linear_forward(params, x))
    ref = reference(params, x)
    assert out.shape == (B, L, d_out)
    assert jnp.allclose(out, ref, rtol=1e-4, atol=1e-4), "mismatch (small / fast path)"

    # --- Tiled path: multi-step K reduction (k grid > 1), multi-tile N, direct
    # accumulation into o_ref, bias-added-once, non-tile-multiple padding.
    M2, K2, N2 = 272, 384, 200
    w2 = jax.random.normal(kp2, (K2, N2), jnp.float32) * 0.05
    b2 = jnp.linspace(-1.0, 1.0, N2, dtype=jnp.float32)
    x2 = jax.random.normal(kx2, (M2, K2), jnp.float32)
    out2 = jax.block_until_ready(linear(x2, w2, b2, tm=128, tn=128, tk=128))
    ref2 = x2 @ w2 + b2
    assert jnp.allclose(out2, ref2, rtol=1e-4, atol=1e-4), "mismatch (tiled + bias)"

    # --- No-bias variant (bias input skipped entirely), tiled path.
    out3 = jax.block_until_ready(linear(x2, w2, None, tm=128, tn=128, tk=128))
    ref3 = x2 @ w2
    assert jnp.allclose(out3, ref3, rtol=1e-4, atol=1e-4), "mismatch (tiled, no bias)"

    print("KERNEL_OK")
</pallas_src>

<mosaic_0001>
module attributes {stable_mosaic.version = 11 : i64} {
  func.func @_fast_kernel_bias(%arg0: i32, %arg1: memref<16x128xf32, #tpu.memory_space<vmem>>, %arg2: memref<128x128xf32, #tpu.memory_space<vmem>>, %arg3: memref<1x128xf32, #tpu.memory_space<vmem>>, %arg4: memref<16x128xf32, #tpu.memory_space<vmem>>) attributes {dimension_semantics = [#tpu.dimension_semantics<parallel>], iteration_bounds = array<i64: 1>, scalar_prefetch = 0 : i64, scratch_operands = 0 : i64, tpu.core_type = #tpu.core_type<tc>, window_params = [{transform_indices = @transform_0, window_bounds = array<i64: 16, 128>}, {pipeline_mode = #tpu.pipeline_mode<synchronous>, transform_indices = @transform_1, window_bounds = array<i64: 128, 128>}, {pipeline_mode = #tpu.pipeline_mode<synchronous>, transform_indices = @transform_2, window_bounds = array<i64: 1, 128>}, {transform_indices = @transform_3, window_bounds = array<i64: 16, 128>}]} {
    %c0 = arith.constant 0 : index
    %c0_0 = arith.constant 0 : index
    %0 = vector.load %arg1[%c0, %c0_0] : memref<16x128xf32, #tpu.memory_space<vmem>>, vector<16x128xf32>
    %c0_1 = arith.constant 0 : index
    %c0_2 = arith.constant 0 : index
    %1 = vector.load %arg2[%c0_1, %c0_2] : memref<128x128xf32, #tpu.memory_space<vmem>>, vector<128x128xf32>
    %cst = arith.constant dense<0.000000e+00> : vector<16x128xf32>
    %2 = tpu.matmul %0, %1, %cst {dimension_numbers = #tpu.dot_dimension_numbers<[1], [0], [0], [1], [0, 0, 1, 1], [], []>} : vector<16x128xf32>, vector<128x128xf32>, vector<16x128xf32> -> vector<16x128xf32>
    %c0_3 = arith.constant 0 : index
    %c0_4 = arith.constant 0 : index
    %3 = vector.load %arg3[%c0_3, %c0_4] : memref<1x128xf32, #tpu.memory_space<vmem>>, vector<1x128xf32>
    %4 = vector.broadcast %3 : vector<1x128xf32> to vector<16x128xf32>
    %5 = arith.addf %2, %4 : vector<16x128xf32>
    %c0_5 = arith.constant 0 : index
    %c0_6 = arith.constant 0 : index
    %6 = vector.load %arg4[%c0_5, %c0_6] : memref<16x128xf32, #tpu.memory_space<vmem>>, vector<16x128xf32>
    tpu.vector_store %arg4[%c0_5, %c0_6], %5 {strides = array<i32>} : memref<16x128xf32, #tpu.memory_space<vmem>>, vector<16x128xf32>,
    return
  }
  func.func @transform_0(%arg0: i32) -> (i32, i32) {
    %c0_i32 = arith.constant 0 : i32
    %c0_i32_0 = arith.constant 0 : i32
    return %arg0, %c0_i32 : i32, i32
  }
  func.func @transform_1(%arg0: i32) -> (i32, i32) {
    %c0_i32 = arith.constant 0 : i32
    %c0_i32_0 = arith.constant 0 : i32
    %c0_i32_1 = arith.constant 0 : i32
    return %c0_i32, %c0_i32_0 : i32, i32
  }
  func.func @transform_2(%arg0: i32) -> (i32, i32) {
    %c0_i32 = arith.constant 0 : i32
    %c0_i32_0 = arith.constant 0 : i32
    %c0_i32_1 = arith.constant 0 : i32
    return %c0_i32, %c0_i32_0 : i32, i32
  }
  func.func @transform_3(%arg0: i32) -> (i32, i32) {
    %c0_i32 = arith.constant 0 : i32
    %c0_i32_0 = arith.constant 0 : i32
    return %arg0, %c0_i32 : i32, i32
  }
}

</mosaic_0001>

<llo_original>
// kernel: tpu_custom_call.1
$region0: #{tpu_custom_call.1}
  #allocation0 [shape = 'u32[]', space=smem, size = 0x4, offset = 0x4, fixed_abs, tag = 'smem constant byte address 0x4 - core index']
  #allocation1 [shape = 'u32[144,128]{1,0:T(1,128)}', space=vmem, size = 0x12000, scoped, tag = 'internal scratch']
  %s0 = inlined_call_operand.hbm [shape: f32[16,128], index: 0, kind: input, shape index: {}]
  %s1 = inlined_call_operand.hbm [shape: f32[128,128], index: 1, kind: input, shape index: {}]
  %s2 = inlined_call_operand.vmem [shape: f32[1,128], index: 2, kind: input, shape index: {}]
  %s3 = inlined_call_operand.hbm [shape: f32[16,128], index: 3, kind: output, shape index: {}]
  %s4 = sld [smem:[#allocation0]]
  $region30: #{tpu_custom_call.1} parent=0
    _
  %s6 = ssub.s32 1, %s4
  %s7 = scalar_select 0, %s6, %s4
  $region1: #{tpu_custom_call.1} parent=0
    #allocation2 [shape = 'u8[8192]{0}', space=vmem, size = 0x2000, scoped, tag = 'input window, operand 0, single buffered']
    #allocation3 [shape = 's32[1]{0}', space=sflag, size = 0x4, scoped, tag = 'scoped memory for tpu_custom_call.1']
    #allocation4 [shape = 's32[1]{0}', space=sflag, size = 0x4, scoped, tag = 'scoped memory for tpu_custom_call.1']
    #allocation5 [shape = 'u8[65536]{0}', space=vmem, size = 0x10000, scoped, tag = 'input window, operand 1, single buffered']
    #allocation6 [shape = 's32[1]{0}', space=sflag, size = 0x4, scoped, tag = 'scoped memory for tpu_custom_call.1']
    #allocation7 [shape = 'u8[8192]{0}', space=vmem, size = 0x2000, scoped, tag = 'output window, operand 0, single buffered']
    %8 = vsyncpa [#allocation3], 0
    %9 = vsyncpa [#allocation6], 0
    %10 = vsyncpa [#allocation4], 0
    // Predicated region
    $region2: #{tpu_custom_call.1} parent=1 // pred_check
      _
    $region3: #{tpu_custom_call.1} parent=1 // pred_check_branch
      %12 = sbr.rel (0) target = $region5
    $region4: #{tpu_custom_call.1} parent=1 // pred_region
      %s14 = ssub.s32 256, 256
      %15 = vsyncadd [#allocation3], %s14
      %s16 = sshll.u32 [#allocation2], 4
      %s17 = int_to_ptr.vmem [resolvable:$true] %s16
      %22 = dma.hbm_to_vmem [thread:$0]  %s0, 256, %s17, [#allocation3], 128, 128, 8
    $region5: #{tpu_custom_call.1} parent=1 // pred_fallthru
      _
    // Predicated region
    $region6: #{tpu_custom_call.1} parent=1 // pred_check
      _
    $region7: #{tpu_custom_call.1} parent=1 // pred_check_branch
      %24 = sbr.rel (0) target = $region9
    $region8: #{tpu_custom_call.1} parent=1 // pred_region
      %s26 = ssub.s32 2048, 2048
      %27 = vsyncadd [#allocation6], %s26
      %s28 = sshll.u32 [#allocation5], 4
      %s29 = int_to_ptr.vmem [resolvable:$true] %s28
      %34 = dma.hbm_to_vmem [thread:$0]  %s1, 2048, %s29, [#allocation6], 128, 128, 8
    $region9: #{tpu_custom_call.1} parent=1 // pred_fallthru
      _
    // Predicated region
    $region10: #{tpu_custom_call.1} parent=1 // pred_check
      _
    $region11: #{tpu_custom_call.1} parent=1 // pred_check_branch
      %36 = sbr.rel (0) target = $region13
    $region12: #{tpu_custom_call.1} parent=1 // pred_region
      _
    $region13: #{tpu_custom_call.1} parent=1 // pred_fallthru
      _
    // Predicated region
    $region14: #{tpu_custom_call.1} parent=1 // pred_check
      _
    $region15: #{tpu_custom_call.1} parent=1 // pred_check_branch
      %38 = sbr.rel (0) target = $region17
    $region16: #{tpu_custom_call.1} parent=1 // pred_region
      %39 = dma.done [#allocation3], 256
    $region17: #{tpu_custom_call.1} parent=1 // pred_fallthru
      _
    // Predicated region
    $region18: #{tpu_custom_call.1} parent=1 // pred_check
      _
    $region19: #{tpu_custom_call.1} parent=1 // pred_check_branch
      %41 = sbr.rel (0) target = $region21
    $region20: #{tpu_custom_call.1} parent=1 // pred_region
      %42 = dma.done [#allocation6], 2048
    $region21: #{tpu_custom_call.1} parent=1 // pred_fallthru
      _
    %v43 = vld [vmem:[#allocation2] sm:$0xff]
    %v44 = vld [vmem:[#allocation2 + $0x8] sm:$0xff]
    %v45 = vld [vmem:[#allocation5] sm:$0xff]
    %v46 = vld [vmem:[#allocation5 + $0x8] sm:$0xff]
    %v47 = vld [vmem:[#allocation5 + $0x10] sm:$0xff]
    %v48 = vld [vmem:[#allocation5 + $0x18] sm:$0xff]
    %v49 = vld [vmem:[#allocation5 + $0x20] sm:$0xff]
    %v50 = vld [vmem:[#allocation5 + $0x28] sm:$0xff]
    %v51 = vld [vmem:[#allocation5 + $0x30] sm:$0xff]
    %v52 = vld [vmem:[#allocation5 + $0x38] sm:$0xff]
    %v53 = vld [vmem:[#allocation5 + $0x40] sm:$0xff]
    %v54 = vld [vmem:[#allocation5 + $0x48] sm:$0xff]
    %v55 = vld [vmem:[#allocation5 + $0x50] sm:$0xff]
    %v56 = vld [vmem:[#allocation5 + $0x58] sm:$0xff]
    %v57 = vld [vmem:[#allocation5 + $0x60] sm:$0xff]
    %v58 = vld [vmem:[#allocation5 + $0x68] sm:$0xff]
    %v59 = vld [vmem:[#allocation5 + $0x70] sm:$0xff]
    %v60 = vld [vmem:[#allocation5 + $0x78] sm:$0xff]
    %v61 = vld [vmem:[%s2] sm:$0x1]
    %v63 = vlaneseq
    %v64 = vshrl.u32 %v63, 7
    %v65 = vsub.s32 0, %v64
    %v66 = vrot.slane %v61, %v65
    %68 = vmatprep.subr.mxu0 0.0
    %69 = vmatpush1.msra.mxu0 %v45
    %70 = vmatprep.subr.mxu0 0.0
    %71 = vmatpush1.msra.mxu0 %v46
    %72 = vmatprep.subr.mxu0 0.0
    %73 = vmatpush1.msra.mxu0 %v47
    %74 = vmatprep.subr.mxu0 0.0
    %75 = vmatpush1.msra.mxu0 %v48
    %76 = vmatprep.subr.mxu0 0.0
    %77 = vmatpush1.msra.mxu0 %v49
    %78 = vmatprep.subr.mxu0 0.0
    %79 = vmatpush1.msra.mxu0 %v50
    %80 = vmatprep.subr.mxu0 0.0
    %81 = vmatpush1.msra.mxu0 %v51
    %82 = vmatprep.subr.mxu0 0.0
    %83 = vmatpush1.msra.mxu0 %v52
    %84 = vmatprep.subr.mxu0 0.0
    %85 = vmatpush1.msra.mxu0 %v53
    %86 = vmatprep.subr.mxu0 0.0
    %87 = vmatpush1.msra.mxu0 %v54
    %88 = vmatprep.subr.mxu0 0.0
    %89 = vmatpush1.msra.mxu0 %v55
    %90 = vmatprep.subr.mxu0 0.0
    %91 = vmatpush1.msra.mxu0 %v56
    %92 = vmatprep.subr.mxu0 0.0
    %93 = vmatpush1.msra.mxu0 %v57
    %94 = vmatprep.subr.mxu0 0.0
    %95 = vmatpush1.msra.mxu0 %v58
    %96 = vmatprep.subr.mxu0 0.0
    %97 = vmatpush1.msra.mxu0 %v59
    %98 = vmatprep.subr.mxu0 0.0
    %99 = vmatpush1.msra.mxu0 %v60
    %100 = vmatprep.subr.mxu0 0.0
    %101 = vmatpush1.msra.mxu0 0.0
    %102 = vmatprep.subr.mxu0 0.0
    %103 = vmatpush1.msra.mxu0 0.0
    %104 = vmatprep.subr.mxu0 0.0
    %105 = vmatpush1.msra.mxu0 0.0
    %106 = vmatprep.subr.mxu0 0.0
    %107 = vmatpush1.msra.mxu0 0.0
    %108 = vmatprep.subr.mxu0 0.0
    %109 = vmatpush1.msra.mxu0 0.0
    %110 = vmatprep.subr.mxu0 0.0
    %111 = vmatpush1.msra.mxu0 0.0
    %112 = vmatprep.subr.mxu0 0.0
    %113 = vmatpush1.msra.mxu0 0.0
    %114 = vmatprep.subr.mxu0 0.0
    %115 = vmatpush1.msra.mxu0 0.0
    %116 = vmatprep.subr.mxu0 0.0
    %117 = vmatpush1.msra.mxu0 0.0
    %118 = vmatprep.subr.mxu0 0.0
    %119 = vmatpush1.msra.mxu0 0.0
    %120 = vmatprep.subr.mxu0 0.0
    %121 = vmatpush1.msra.mxu0 0.0
    %122 = vmatprep.subr.mxu0 0.0
    %123 = vmatpush1.msra.mxu0 0.0
    %124 = vmatprep.subr.mxu0 0.0
    %125 = vmatpush1.msra.mxu0 0.0
    %126 = vmatprep.subr.mxu0 0.0
    %127 = vmatpush1.msra.mxu0 0.0
    %128 = vmatprep.subr.mxu0 0.0
    %129 = vmatpush1.msra.mxu0 0.0
    %130 = vmatprep.subr.mxu0 0.0
    %131 = vmatpush1.msra.mxu0 0.0
    %132 = vmatprep.mubr.f32.mxu0 0.0
    %133 = vmatmul.mubr.f32.gmra.mrb[0].mxu0 %v43
    %v134 = vpop.f32.mrb[0].mxu0
    %v135 = vadd.f32 %v66, %v134
    %v136 = vpop.f32.mrb[0].mxu0
    %137 = vmatprep.mubr.f32.mxu0 0.0
    %138 = vmatmul.mubr.f32.gmra.mrb[0].mxu0 %v44
    %v139 = vpop.f32.mrb[0].mxu0
    %v140 = vadd.f32 %v66, %v139
    %v141 = vpop.f32.mrb[0].mxu0
    %142 = vdwg.mxu0
    %143 = vst [vmem:[#allocation7] sm:$0xff] %v135
    %144 = vst [vmem:[#allocation7 + $0x8] sm:$0xff] %v140
    // Predicated region
    $region22: #{tpu_custom_call.1} parent=1 // pred_check
      _
    $region23: #{tpu_custom_call.1} parent=1 // pred_check_branch
      %146 = sbr.rel (0) target = $region25
    $region24: #{tpu_custom_call.1} parent=1 // pred_region
      %s148 = ssub.s32 256, 256
      %149 = vsyncadd [#allocation4], %s148
      %s150 = sshll.u32 [#allocation7], 4
      %s151 = int_to_ptr.vmem [resolvable:$true] %s150
      %156 = dma.vmem_to_hbm [thread:$0]  %s151, 256, %s3, [#allocation4], 128, 128, 8
    $region25: #{tpu_custom_call.1} parent=1 // pred_fallthru
      _
    // Predicated region
    $region26: #{tpu_custom_call.1} parent=1 // pred_check
      _
    $region27: #{tpu_custom_call.1} parent=1 // pred_check_branch
      %158 = sbr.rel (0) target = $region29
    $region28: #{tpu_custom_call.1} parent=1 // pred_region
      %159 = dma.done [#allocation4], 256
    $region29: #{tpu_custom_call.1} parent=1 // pred_fallthru
      _
    %160 = vsyncpa [#allocation3], 1
    %161 = vsyncpa [#allocation6], 1
    %162 = vsyncpa [#allocation4], 1

</llo_original>
